<compile_context>
chip_gen: v6e
topology: v6e:2x2x1
jax: 0.10.0
libtpu: 0.0.40
codegen_flags: <defaults>
</compile_context>

<pallas_src>
import jax
import jax.numpy as jnp
from jax.experimental import pallas as pl
from jax.experimental.pallas import tpu as pltpu


def _round_up(n, m):
    return ((n + m - 1) // m) * m


def _mlp_kernel(x_ref, w1_ref, b1_ref, w2_ref, b2_ref, w3_ref, b3_ref, o_ref):
    # Layer 1: (TB, p*D) @ (p*D, p*16) + (1, p*16) -> ReLU   (MXU, f32 accumulate)
    h1 = jnp.dot(x_ref[...], w1_ref[...], preferred_element_type=jnp.float32)
    h1 = jnp.maximum(h1 + b1_ref[...], 0.0)
    # Layer 2: (TB, p*16) @ (p*16, p*4) + (1, p*4) -> ReLU
    h2 = jnp.dot(h1, w2_ref[...], preferred_element_type=jnp.float32)
    h2 = jnp.maximum(h2 + b2_ref[...], 0.0)
    # Layer 3: (TB, p*4) @ (p*4, p) + (1, p)
    out = jnp.dot(h2, w3_ref[...], preferred_element_type=jnp.float32) + b3_ref[...]
    o_ref[...] = out.astype(o_ref.dtype)


def _block_diag(w, p):
    """(din, dout) -> (p*din, p*dout) block-diagonal with p copies of w."""
    if p == 1:
        return w
    din, dout = w.shape
    eye = jnp.eye(p, dtype=w.dtype)
    return (eye[:, None, :, None] * w[None, :, None, :]).reshape(p * din, p * dout)


def _tile_bias(b, p):
    """(1, dout) -> (1, p*dout)."""
    return b if p == 1 else jnp.tile(b, (1, p))


def covid_model_forward(x, params, tile_rows=None):
    """x: (B, D); returns (B,) float32 — matches COVIDModel.forward (...).squeeze(1)."""
    w1, b1, w2, b2, w3, b3 = params
    B, D = x.shape

    # Lane-dense packing factor: fold p = 128//D batch rows into one 128-lane row when the
    # shapes allow it (contiguous reshape, no HBM data movement). Otherwise p = 1 fallback.
    p = 1
    if D <= 128 and 128 % D == 0 and (128 // D) > 1 and B % (128 // D) == 0:
        p = 128 // D
    rows, row_feats = B // p, p * D
    x_rows = x if p == 1 else x.reshape(rows, row_feats)

    # Block-diagonal weight expansion (tiny, done once). Match the input dtype so a bf16 x
    # hits the MXU natively; accumulation stays f32.
    w_dtype = x.dtype if x.dtype == jnp.bfloat16 else jnp.float32
    packed = [
        _block_diag(w1, p).astype(w_dtype), _tile_bias(b1, p).astype(w_dtype),
        _block_diag(w2, p).astype(w_dtype), _tile_bias(b2, p).astype(w_dtype),
        _block_diag(w3, p).astype(w_dtype), _tile_bias(b3, p).astype(w_dtype),
    ]

    # Tile sizing: target ~4 MiB of x per grid step (small tiles are per-step-overhead bound,
    # ~0.35 us/step), but keep >= 4 grid steps when the batch is large enough so the
    # "parallel" axis gives both TensorCores work and the pipeline has overlap.
    itemsize = x.dtype.itemsize
    lane_x = _round_up(row_feats, 128)          # VMEM lane padding of the x block
    if tile_rows is None:
        tile_rows = max(512, (4 << 20) // (lane_x * itemsize))
    tile_rows = _round_up(max(int(tile_rows), 8), 8)

    if rows <= tile_rows:
        TB = rows                               # single block; full-extent dim is always legal
    else:
        quarter = _round_up(pl.cdiv(rows, 4), 8)
        TB = min(tile_rows, quarter)            # multiple of 8; ragged last block is masked
    grid = (pl.cdiv(rows, TB),)

    x_spec = pl.BlockSpec((TB, row_feats), lambda i: (i, 0))
    out_spec = pl.BlockSpec((TB, p), lambda i: (i, 0))

    # Constant index_map -> weights/biases stay resident in VMEM across all grid steps.
    # (pl.Buffered(1) on these would shave a little VMEM; skipped for portability.)
    def const_spec(arr):
        return pl.BlockSpec(arr.shape, lambda i: (0, 0))

    # Explicit scoped-VMEM budget from the *padded* block footprints (lane-padded to 128),
    # double-buffered x + out blocks plus weights and slack.
    x_buf = TB * lane_x * itemsize
    out_buf = TB * 128 * 4
    w_bytes = sum(_round_up(a.shape[0], 8) * _round_up(a.shape[1], 128) * a.dtype.itemsize
                  for a in packed)
    vmem_limit = int(min(max(2 * (x_buf + out_buf) + 2 * w_bytes + (4 << 20), 32 << 20),
                         48 << 20))

    cost = pl.CostEstimate(
        flops=2 * B * (D * 16 + 16 * 4 + 4 * 1),
        bytes_accessed=B * D * itemsize + B * 4
        + sum(int(a.size) * a.dtype.itemsize for a in params),
        transcendentals=0,
    )

    out = pl.pallas_call(
        _mlp_kernel,
        out_shape=jax.ShapeDtypeStruct((rows, p), jnp.float32),
        grid=grid,
        in_specs=[x_spec] + [const_spec(a) for a in packed],
        out_specs=out_spec,
        compiler_params=pltpu.CompilerParams(
            dimension_semantics=("parallel",),
            vmem_limit_bytes=vmem_limit,
        ),
        cost_estimate=cost,
    )(x_rows, *packed)

    # (rows, p) row-major is exactly batch order; reshape == torch's squeeze(1).
    return out.reshape(-1)[:B]


def init_params(key, input_size):
    """Deterministic init matching the module's shapes.
    PyTorch nn.Linear(in, out) has weight (out, in), bias (out,); we store the transposed
    weight (in, out) and a (1, out) bias so the kernel computes x @ W + b."""
    dims = [(input_size, 16), (16, 4), (4, 1)]
    params = []
    for fan_in, fan_out in dims:
        kw, kb, key = jax.random.split(key, 3)
        bound = 1.0 / jnp.sqrt(fan_in)
        w = jax.random.uniform(kw, (fan_in, fan_out), jnp.float32, -bound, bound)
        b = jax.random.uniform(kb, (1, fan_out), jnp.float32, -bound, bound)
        params.extend([w, b])
    return tuple(params)


def _reference(x, params):
    w1, b1, w2, b2, w3, b3 = params
    h1 = jnp.maximum(x @ w1 + b1, 0.0)
    h2 = jnp.maximum(h1 @ w2 + b2, 0.0)
    return (h2 @ w3 + b3)[:, 0]


if __name__ == "__main__":
    key = jax.random.PRNGKey(0)
    kx, kx2, kx3, kp = jax.random.split(key, 4)

    # Small shape consistent with the module (packed path, single block).
    batch, input_size = 8, 32
    x = jax.random.normal(kx, (batch, input_size), jnp.float32)
    params = init_params(kp, input_size)

    y = covid_model_forward(x, params)
    jax.block_until_ready(y)
    y_ref = _reference(x, params)
    assert y.shape == (batch,)
    assert jnp.allclose(y, y_ref, atol=1e-5, rtol=1e-5)

    # Multi-tile grid with a ragged, masked last block on the packed path (no jnp.pad).
    batch2 = 2500
    x2 = jax.random.normal(kx2, (batch2, input_size), jnp.float32)
    y2 = covid_model_forward(x2, params, tile_rows=64)
    jax.block_until_ready(y2)
    y2_ref = _reference(x2, params)
    assert y2.shape == (batch2,)
    assert jnp.allclose(y2, y2_ref, atol=1e-5, rtol=1e-5)

    # Batch not divisible by the packing factor -> unpacked (p=1) fallback path.
    batch3 = 37
    x3 = jax.random.normal(kx3, (batch3, input_size), jnp.float32)
    y3 = covid_model_forward(x3, params)
    jax.block_until_ready(y3)
    y3_ref = _reference(x3, params)
    assert y3.shape == (batch3,)
    assert jnp.allclose(y3, y3_ref, atol=1e-5, rtol=1e-5)

    print("KERNEL_OK")
</pallas_src>

<mosaic_0001>
module attributes {stable_mosaic.version = 11 : i64} {
  func.func @_mlp_kernel(%arg0: i32, %arg1: memref<2x128xf32, #tpu.memory_space<vmem>>, %arg2: memref<128x64xf32, #tpu.memory_space<vmem>>, %arg3: memref<1x64xf32, #tpu.memory_space<vmem>>, %arg4: memref<64x16xf32, #tpu.memory_space<vmem>>, %arg5: memref<1x16xf32, #tpu.memory_space<vmem>>, %arg6: memref<16x4xf32, #tpu.memory_space<vmem>>, %arg7: memref<1x4xf32, #tpu.memory_space<vmem>>, %arg8: memref<2x4xf32, #tpu.memory_space<vmem>>) attributes {dimension_semantics = [#tpu.dimension_semantics<parallel>], iteration_bounds = array<i64: 1>, scalar_prefetch = 0 : i64, scratch_operands = 0 : i64, tpu.core_type = #tpu.core_type<tc>, window_params = [{transform_indices = @transform_0, window_bounds = array<i64: 2, 128>}, {pipeline_mode = #tpu.pipeline_mode<synchronous>, transform_indices = @transform_1, window_bounds = array<i64: 128, 64>}, {pipeline_mode = #tpu.pipeline_mode<synchronous>, transform_indices = @transform_2, window_bounds = array<i64: 1, 64>}, {pipeline_mode = #tpu.pipeline_mode<synchronous>, transform_indices = @transform_3, window_bounds = array<i64: 64, 16>}, {pipeline_mode = #tpu.pipeline_mode<synchronous>, transform_indices = @transform_4, window_bounds = array<i64: 1, 16>}, {pipeline_mode = #tpu.pipeline_mode<synchronous>, transform_indices = @transform_5, window_bounds = array<i64: 16, 4>}, {pipeline_mode = #tpu.pipeline_mode<synchronous>, transform_indices = @transform_6, window_bounds = array<i64: 1, 4>}, {transform_indices = @transform_7, window_bounds = array<i64: 2, 4>}]} {
    %c0 = arith.constant 0 : index
    %c0_0 = arith.constant 0 : index
    %0 = vector.load %arg1[%c0, %c0_0] : memref<2x128xf32, #tpu.memory_space<vmem>>, vector<2x128xf32>
    %c0_1 = arith.constant 0 : index
    %c0_2 = arith.constant 0 : index
    %1 = vector.load %arg2[%c0_1, %c0_2] : memref<128x64xf32, #tpu.memory_space<vmem>>, vector<128x64xf32>
    %cst = arith.constant dense<0.000000e+00> : vector<2x64xf32>
    %2 = tpu.matmul %0, %1, %cst {dimension_numbers = #tpu.dot_dimension_numbers<[1], [0], [0], [1], [0, 0, 1, 1], [], []>} : vector<2x128xf32>, vector<128x64xf32>, vector<2x64xf32> -> vector<2x64xf32>
    %c0_3 = arith.constant 0 : index
    %c0_4 = arith.constant 0 : index
    %3 = vector.load %arg3[%c0_3, %c0_4] : memref<1x64xf32, #tpu.memory_space<vmem>>, vector<1x64xf32>
    %4 = vector.broadcast %3 : vector<1x64xf32> to vector<2x64xf32>
    %5 = arith.addf %2, %4 : vector<2x64xf32>
    %cst_5 = arith.constant 0.000000e+00 : f32
    %6 = vector.broadcast %cst_5 : f32 to vector<2x64xf32>
    %7 = arith.maximumf %5, %6 : vector<2x64xf32>
    %c0_6 = arith.constant 0 : index
    %c0_7 = arith.constant 0 : index
    %8 = vector.load %arg4[%c0_6, %c0_7] : memref<64x16xf32, #tpu.memory_space<vmem>>, vector<64x16xf32>
    %cst_8 = arith.constant dense<0.000000e+00> : vector<2x16xf32>
    %9 = tpu.matmul %7, %8, %cst_8 {dimension_numbers = #tpu.dot_dimension_numbers<[1], [0], [0], [1], [0, 0, 1, 1], [], []>} : vector<2x64xf32>, vector<64x16xf32>, vector<2x16xf32> -> vector<2x16xf32>
    %c0_9 = arith.constant 0 : index
    %c0_10 = arith.constant 0 : index
    %10 = vector.load %arg5[%c0_9, %c0_10] : memref<1x16xf32, #tpu.memory_space<vmem>>, vector<1x16xf32>
    %11 = vector.broadcast %10 : vector<1x16xf32> to vector<2x16xf32>
    %12 = arith.addf %9, %11 : vector<2x16xf32>
    %cst_11 = arith.constant 0.000000e+00 : f32
    %13 = vector.broadcast %cst_11 : f32 to vector<2x16xf32>
    %14 = arith.maximumf %12, %13 : vector<2x16xf32>
    %c0_12 = arith.constant 0 : index
    %c0_13 = arith.constant 0 : index
    %15 = vector.load %arg6[%c0_12, %c0_13] : memref<16x4xf32, #tpu.memory_space<vmem>>, vector<16x4xf32>
    %cst_14 = arith.constant dense<0.000000e+00> : vector<2x4xf32>
    %16 = tpu.matmul %14, %15, %cst_14 {dimension_numbers = #tpu.dot_dimension_numbers<[1], [0], [0], [1], [0, 0, 1, 1], [], []>} : vector<2x16xf32>, vector<16x4xf32>, vector<2x4xf32> -> vector<2x4xf32>
    %c0_15 = arith.constant 0 : index
    %c0_16 = arith.constant 0 : index
    %17 = vector.load %arg7[%c0_15, %c0_16] : memref<1x4xf32, #tpu.memory_space<vmem>>, vector<1x4xf32>
    %18 = vector.broadcast %17 : vector<1x4xf32> to vector<2x4xf32>
    %19 = arith.addf %16, %18 : vector<2x4xf32>
    %c0_17 = arith.constant 0 : index
    %c0_18 = arith.constant 0 : index
    %20 = vector.load %arg8[%c0_17, %c0_18] : memref<2x4xf32, #tpu.memory_space<vmem>>, vector<2x4xf32>
    tpu.vector_store %arg8[%c0_17, %c0_18], %19 {strides = array<i32>} : memref<2x4xf32, #tpu.memory_space<vmem>>, vector<2x4xf32>,
    return
  }
  func.func @transform_0(%arg0: i32) -> (i32, i32) {
    %c0_i32 = arith.constant 0 : i32
    %c0_i32_0 = arith.constant 0 : i32
    return %arg0, %c0_i32 : i32, i32
  }
  func.func @transform_1(%arg0: i32) -> (i32, i32) {
    %c0_i32 = arith.constant 0 : i32
    %c0_i32_0 = arith.constant 0 : i32
    %c0_i32_1 = arith.constant 0 : i32
    return %c0_i32, %c0_i32_0 : i32, i32
  }
  func.func @transform_2(%arg0: i32) -> (i32, i32) {
    %c0_i32 = arith.constant 0 : i32
    %c0_i32_0 = arith.constant 0 : i32
    %c0_i32_1 = arith.constant 0 : i32
    return %c0_i32, %c0_i32_0 : i32, i32
  }
  func.func @transform_3(%arg0: i32) -> (i32, i32) {
    %c0_i32 = arith.constant 0 : i32
    %c0_i32_0 = arith.constant 0 : i32
    %c0_i32_1 = arith.constant 0 : i32
    return %c0_i32, %c0_i32_0 : i32, i32
  }
  func.func @transform_4(%arg0: i32) -> (i32, i32) {
    %c0_i32 = arith.constant 0 : i32
    %c0_i32_0 = arith.constant 0 : i32
    %c0_i32_1 = arith.constant 0 : i32
    return %c0_i32, %c0_i32_0 : i32, i32
  }
  func.func @transform_5(%arg0: i32) -> (i32, i32) {
    %c0_i32 = arith.constant 0 : i32
    %c0_i32_0 = arith.constant 0 : i32
    %c0_i32_1 = arith.constant 0 : i32
    return %c0_i32, %c0_i32_0 : i32, i32
  }
  func.func @transform_6(%arg0: i32) -> (i32, i32) {
    %c0_i32 = arith.constant 0 : i32
    %c0_i32_0 = arith.constant 0 : i32
    %c0_i32_1 = arith.constant 0 : i32
    return %c0_i32, %c0_i32_0 : i32, i32
  }
  func.func @transform_7(%arg0: i32) -> (i32, i32) {
    %c0_i32 = arith.constant 0 : i32
    %c0_i32_0 = arith.constant 0 : i32
    return %arg0, %c0_i32 : i32, i32
  }
}

</mosaic_0001>

<llo_original>
// kernel: tpu_custom_call.1
$region0: #{tpu_custom_call.1}
  #allocation0 [shape = 'u32[]', space=smem, size = 0x4, offset = 0x4, fixed_abs, tag = 'smem constant byte address 0x4 - core index']
  #allocation1 [shape = 'u32[144,128]{1,0:T(1,128)}', space=vmem, size = 0x12000, scoped, tag = 'internal scratch']
  %s0 = inlined_call_operand.vmem [shape: f32[2,128], index: 0, kind: input, shape index: {}]
  %s1 = inlined_call_operand.vmem [shape: f32[128,64], index: 1, kind: input, shape index: {}]
  %s2 = inlined_call_operand.vmem [shape: f32[1,64], index: 2, kind: input, shape index: {}]
  %s3 = inlined_call_operand.vmem [shape: f32[64,16], index: 3, kind: input, shape index: {}]
  %s4 = inlined_call_operand.vmem [shape: f32[1,16], index: 4, kind: input, shape index: {}]
  %s5 = inlined_call_operand.vmem [shape: f32[16,4], index: 5, kind: input, shape index: {}]
  %s6 = inlined_call_operand.vmem [shape: f32[1,4], index: 6, kind: input, shape index: {}]
  %s7 = inlined_call_operand.hbm [shape: f32[2,4], index: 7, kind: output, shape index: {}]
  %s8 = sld [smem:[#allocation0]]
  $region38: #{tpu_custom_call.1} parent=0
    _
  %s10 = ssub.s32 1, %s8
  %s11 = scalar_select 0, %s10, %s8
  $region1: #{tpu_custom_call.1} parent=0
    #allocation2 [shape = 'u8[1024]{0}', space=vmem, size = 0x400, scoped, tag = 'output window, operand 0, single buffered']
    #allocation3 [shape = 's32[1]{0}', space=sflag, size = 0x4, scoped, tag = 'scoped memory for tpu_custom_call.1']
    %12 = vsyncpa [#allocation3], 0
    // Predicated region
    $region2: #{tpu_custom_call.1} parent=1 // pred_check
      _
    $region3: #{tpu_custom_call.1} parent=1 // pred_check_branch
      %14 = sbr.rel (0) target = $region5
    $region4: #{tpu_custom_call.1} parent=1 // pred_region
      _
    $region5: #{tpu_custom_call.1} parent=1 // pred_fallthru
      _
    // Predicated region
    $region6: #{tpu_custom_call.1} parent=1 // pred_check
      _
    $region7: #{tpu_custom_call.1} parent=1 // pred_check_branch
      %16 = sbr.rel (0) target = $region9
    $region8: #{tpu_custom_call.1} parent=1 // pred_region
      _
    $region9: #{tpu_custom_call.1} parent=1 // pred_fallthru
      _
    // Predicated region
    $region10: #{tpu_custom_call.1} parent=1 // pred_check
      _
    $region11: #{tpu_custom_call.1} parent=1 // pred_check_branch
      %18 = sbr.rel (0) target = $region13
    $region12: #{tpu_custom_call.1} parent=1 // pred_region
      _
    $region13: #{tpu_custom_call.1} parent=1 // pred_fallthru
      _
    // Predicated region
    $region14: #{tpu_custom_call.1} parent=1 // pred_check
      _
    $region15: #{tpu_custom_call.1} parent=1 // pred_check_branch
      %20 = sbr.rel (0) target = $region17
    $region16: #{tpu_custom_call.1} parent=1 // pred_region
      _
    $region17: #{tpu_custom_call.1} parent=1 // pred_fallthru
      _
    // Predicated region
    $region18: #{tpu_custom_call.1} parent=1 // pred_check
      _
    $region19: #{tpu_custom_call.1} parent=1 // pred_check_branch
      %22 = sbr.rel (0) target = $region21
    $region20: #{tpu_custom_call.1} parent=1 // pred_region
      _
    $region21: #{tpu_custom_call.1} parent=1 // pred_fallthru
      _
    // Predicated region
    $region22: #{tpu_custom_call.1} parent=1 // pred_check
      _
    $region23: #{tpu_custom_call.1} parent=1 // pred_check_branch
      %24 = sbr.rel (0) target = $region25
    $region24: #{tpu_custom_call.1} parent=1 // pred_region
      _
    $region25: #{tpu_custom_call.1} parent=1 // pred_fallthru
      _
    // Predicated region
    $region26: #{tpu_custom_call.1} parent=1 // pred_check
      _
    $region27: #{tpu_custom_call.1} parent=1 // pred_check_branch
      %26 = sbr.rel (0) target = $region29
    $region28: #{tpu_custom_call.1} parent=1 // pred_region
      _
    $region29: #{tpu_custom_call.1} parent=1 // pred_fallthru
      _
    %v27 = vld [vmem:[%s0] sm:$0x3]
    %v28 = vld [vmem:[%s1] sm:$0xff]
    %v29 = vld [vmem:[%s1 + $0x8] sm:$0xff]
    %v30 = vld [vmem:[%s1 + $0x10] sm:$0xff]
    %v31 = vld [vmem:[%s1 + $0x18] sm:$0xff]
    %v32 = vld [vmem:[%s1 + $0x20] sm:$0xff]
    %v33 = vld [vmem:[%s1 + $0x28] sm:$0xff]
    %v34 = vld [vmem:[%s1 + $0x30] sm:$0xff]
    %v35 = vld [vmem:[%s1 + $0x38] sm:$0xff]
    %v36 = vld [vmem:[%s1 + $0x40] sm:$0xff]
    %v37 = vld [vmem:[%s1 + $0x48] sm:$0xff]
    %v38 = vld [vmem:[%s1 + $0x50] sm:$0xff]
    %v39 = vld [vmem:[%s1 + $0x58] sm:$0xff]
    %v40 = vld [vmem:[%s1 + $0x60] sm:$0xff]
    %v41 = vld [vmem:[%s1 + $0x68] sm:$0xff]
    %v42 = vld [vmem:[%s1 + $0x70] sm:$0xff]
    %v43 = vld [vmem:[%s1 + $0x78] sm:$0xff]
    %v44 = vld [vmem:[%s2] sm:$0x1]
    %v46 = vlaneseq
    %v47 = vshrl.u32 %v46, 7
    %v48 = vsub.s32 0, %v47
    %v49 = vrot.slane %v44, %v48
    %51 = vmatprep.subr.mxu0 0.0
    %52 = vmatpush1.msra.mxu0 %v43
    %53 = vmatprep.subr.mxu0 0.0
    %54 = vmatpush1.msra.mxu0 %v42
    %55 = vmatprep.subr.mxu0 0.0
    %56 = vmatpush1.msra.mxu0 %v41
    %57 = vmatprep.subr.mxu0 0.0
    %58 = vmatpush1.msra.mxu0 %v40
    %59 = vmatprep.subr.mxu0 0.0
    %60 = vmatpush1.msra.mxu0 %v39
    %61 = vmatprep.subr.mxu0 0.0
    %62 = vmatpush1.msra.mxu0 %v38
    %63 = vmatprep.subr.mxu0 0.0
    %64 = vmatpush1.msra.mxu0 %v37
    %65 = vmatprep.subr.mxu0 0.0
    %66 = vmatpush1.msra.mxu0 %v36
    %67 = vmatprep.subr.mxu0 0.0
    %68 = vmatpush1.msra.mxu0 %v35
    %69 = vmatprep.subr.mxu0 0.0
    %70 = vmatpush1.msra.mxu0 %v34
    %71 = vmatprep.subr.mxu0 0.0
    %72 = vmatpush1.msra.mxu0 %v33
    %73 = vmatprep.subr.mxu0 0.0
    %74 = vmatpush1.msra.mxu0 %v32
    %75 = vmatprep.subr.mxu0 0.0
    %76 = vmatpush1.msra.mxu0 %v31
    %77 = vmatprep.subr.mxu0 0.0
    %78 = vmatpush1.msra.mxu0 %v30
    %79 = vmatprep.subr.mxu0 0.0
    %80 = vmatpush1.msra.mxu0 %v29
    %81 = vmatprep.subr.mxu0 0.0
    %82 = vmatpush1.msra.mxu0 %v28
    %83 = vmatprep.subr.mxu0 0.0
    %84 = vmatpush2.msra.mxu0 0.0
    %85 = vmatprep.subr.mxu0 0.0
    %86 = vmatpush2.msra.mxu0 0.0
    %87 = vmatprep.subr.mxu0 0.0
    %88 = vmatpush2.msra.mxu0 0.0
    %89 = vmatprep.subr.mxu0 0.0
    %90 = vmatpush2.msra.mxu0 0.0
    %91 = vmatprep.subr.mxu0 0.0
    %92 = vmatpush2.msra.mxu0 0.0
    %93 = vmatprep.subr.mxu0 0.0
    %94 = vmatpush2.msra.mxu0 0.0
    %95 = vmatprep.subr.mxu0 0.0
    %96 = vmatpush2.msra.mxu0 0.0
    %97 = vmatprep.subr.mxu0 0.0
    %98 = vmatpush2.msra.mxu0 0.0
    %99 = vmatprep.subr.mxu0 0.0
    %100 = vmatpush2.msra.mxu0 0.0
    %101 = vmatprep.subr.mxu0 0.0
    %102 = vmatpush2.msra.mxu0 0.0
    %103 = vmatprep.subr.mxu0 0.0
    %104 = vmatpush2.msra.mxu0 0.0
    %105 = vmatprep.subr.mxu0 0.0
    %106 = vmatpush2.msra.mxu0 0.0
    %107 = vmatprep.subr.mxu0 0.0
    %108 = vmatpush2.msra.mxu0 0.0
    %109 = vmatprep.subr.mxu0 0.0
    %110 = vmatpush2.msra.mxu0 0.0
    %111 = vmatprep.subr.mxu0 0.0
    %112 = vmatpush2.msra.mxu0 0.0
    %113 = vmatprep.subr.mxu0 0.0
    %114 = vmatpush2.msra.mxu0 0.0
    %115 = vmatprep.mubr.f32.mxu0 0.0
    %116 = vmatmul.mubr.f32.gmra.mxu0 %v27
    %v117 = vpop.f32.mrf.mxu0
    %v118 = vadd.f32 %v49, %v117
    %v119 = vpop.f32.mrf.mxu0
    %120 = vdwg.mxu0
    %v121 = vmax.f32 %v118, 0.0
    %v122 = vld [vmem:[%s3] sm:$0xff]
    %v123 = vld [vmem:[%s3 + $0x8] sm:$0xff]
    %v124 = vld [vmem:[%s3 + $0x10] sm:$0xff]
    %v125 = vld [vmem:[%s3 + $0x18] sm:$0xff]
    %v126 = vld [vmem:[%s3 + $0x20] sm:$0xff]
    %v127 = vld [vmem:[%s3 + $0x28] sm:$0xff]
    %v128 = vld [vmem:[%s3 + $0x30] sm:$0xff]
    %v129 = vld [vmem:[%s3 + $0x38] sm:$0xff]
    %v130 = vld [vmem:[%s4] sm:$0x1]
    %v132 = vlaneseq
    %v133 = vshrl.u32 %v132, 7
    %v134 = vsub.s32 0, %v133
    %v135 = vrot.slane %v130, %v134
    %vm137 = vcmask 523264
    %v139 = vsel %vm137, %v121, 0
    %141 = vmatprep.subr.mxu0 0.0
    %142 = vmatpush1.msra.mxu0 0.0
    %143 = vmatprep.subr.mxu0 0.0
    %144 = vmatpush1.msra.mxu0 0.0
    %145 = vmatprep.subr.mxu0 0.0
    %146 = vmatpush1.msra.mxu0 0.0
    %147 = vmatprep.subr.mxu0 0.0
    %148 = vmatpush1.msra.mxu0 0.0
    %149 = vmatprep.subr.mxu0 0.0
    %150 = vmatpush1.msra.mxu0 0.0
    %151 = vmatprep.subr.mxu0 0.0
    %152 = vmatpush1.msra.mxu0 0.0
    %153 = vmatprep.subr.mxu0 0.0
    %154 = vmatpush1.msra.mxu0 0.0
    %155 = vmatprep.subr.mxu0 0.0
    %156 = vmatpush1.msra.mxu0 0.0
    %157 = vmatprep.subr.mxu0 0.0
    %158 = vmatpush1.msra.mxu0 %v129
    %159 = vmatprep.subr.mxu0 0.0
    %160 = vmatpush1.msra.mxu0 %v128
    %161 = vmatprep.subr.mxu0 0.0
    %162 = vmatpush1.msra.mxu0 %v127
    %163 = vmatprep.subr.mxu0 0.0
    %164 = vmatpush1.msra.mxu0 %v126
    %165 = vmatprep.subr.mxu0 0.0
    %166 = vmatpush1.msra.mxu0 %v125
    %167 = vmatprep.subr.mxu0 0.0
    %168 = vmatpush1.msra.mxu0 %v124
    %169 = vmatprep.subr.mxu0 0.0
    %170 = vmatpush1.msra.mxu0 %v123
    %171 = vmatprep.subr.mxu0 0.0
    %172 = vmatpush1.msra.mxu0 %v122
    %173 = vmatprep.subr.mxu0 0.0
    %174 = vmatpush2.msra.mxu0 0.0
    %175 = vmatprep.subr.mxu0 0.0
    %176 = vmatpush2.msra.mxu0 0.0
    %177 = vmatprep.subr.mxu0 0.0
    %178 = vmatpush2.msra.mxu0 0.0
    %179 = vmatprep.subr.mxu0 0.0
    %180 = vmatpush2.msra.mxu0 0.0
    %181 = vmatprep.subr.mxu0 0.0
    %182 = vmatpush2.msra.mxu0 0.0
    %183 = vmatprep.subr.mxu0 0.0
    %184 = vmatpush2.msra.mxu0 0.0
    %185 = vmatprep.subr.mxu0 0.0
    %186 = vmatpush2.msra.mxu0 0.0
    %187 = vmatprep.subr.mxu0 0.0
    %188 = vmatpush2.msra.mxu0 0.0
    %189 = vmatprep.subr.mxu0 0.0
    %190 = vmatpush2.msra.mxu0 0.0
    %191 = vmatprep.subr.mxu0 0.0
    %192 = vmatpush2.msra.mxu0 0.0
    %193 = vmatprep.subr.mxu0 0.0
    %194 = vmatpush2.msra.mxu0 0.0
    %195 = vmatprep.subr.mxu0 0.0
    %196 = vmatpush2.msra.mxu0 0.0
    %197 = vmatprep.subr.mxu0 0.0
    %198 = vmatpush2.msra.mxu0 0.0
    %199 = vmatprep.subr.mxu0 0.0
    %200 = vmatpush2.msra.mxu0 0.0
    %201 = vmatprep.subr.mxu0 0.0
    %202 = vmatpush2.msra.mxu0 0.0
    %203 = vmatprep.subr.mxu0 0.0
    %204 = vmatpush2.msra.mxu0 0.0
    %205 = vmatprep.mubr.f32.mxu0 0.0
    %206 = vmatmul.mubr.f32.gmra.mxu0 %v139
    %v207 = vpop.f32.mrf.mxu0
    %v208 = vadd.f32 %v135, %v207
    %v209 = vpop.f32.mrf.mxu0
    %210 = vdwg.mxu0
    %v211 = vmax.f32 %v208, 0.0
    %v212 = vld [vmem:[%s5] sm:$0xff]
    %v213 = vld [vmem:[%s5 + $0x8] sm:$0xff]
    %v214 = vld [vmem:[%s6] sm:$0x1]
    %v216 = vlaneseq
    %v217 = vshrl.u32 %v216, 7
    %v218 = vsub.s32 0, %v217
    %v219 = vrot.slane %v214, %v218
    %vm221 = vcmask 130048
    %v223 = vsel %vm221, %v211, 0
    %225 = vmatprep.subr.mxu0 0.0
    %226 = vmatpush1.msra.mxu0 0.0
    %227 = vmatprep.subr.mxu0 0.0
    %228 = vmatpush1.msra.mxu0 0.0
    %229 = vmatprep.subr.mxu0 0.0
    %230 = vmatpush1.msra.mxu0 0.0
    %231 = vmatprep.subr.mxu0 0.0
    %232 = vmatpush1.msra.mxu0 0.0
    %233 = vmatprep.subr.mxu0 0.0
    %234 = vmatpush1.msra.mxu0 0.0
    %235 = vmatprep.subr.mxu0 0.0
    %236 = vmatpush1.msra.mxu0 0.0
    %237 = vmatprep.subr.mxu0 0.0
    %238 = vmatpush1.msra.mxu0 0.0
    %239 = vmatprep.subr.mxu0 0.0
    %240 = vmatpush1.msra.mxu0 0.0
    %241 = vmatprep.subr.mxu0 0.0
    %242 = vmatpush1.msra.mxu0 0.0
    %243 = vmatprep.subr.mxu0 0.0
    %244 = vmatpush1.msra.mxu0 0.0
    %245 = vmatprep.subr.mxu0 0.0
    %246 = vmatpush1.msra.mxu0 0.0
    %247 = vmatprep.subr.mxu0 0.0
    %248 = vmatpush1.msra.mxu0 0.0
    %249 = vmatprep.subr.mxu0 0.0
    %250 = vmatpush1.msra.mxu0 0.0
    %251 = vmatprep.subr.mxu0 0.0
    %252 = vmatpush1.msra.mxu0 0.0
    %253 = vmatprep.subr.mxu0 0.0
    %254 = vmatpush1.msra.mxu0 %v213
    %255 = vmatprep.subr.mxu0 0.0
    %256 = vmatpush1.msra.mxu0 %v212
    %257 = vmatprep.subr.mxu0 0.0
    %258 = vmatpush2.msra.mxu0 0.0
    %259 = vmatprep.subr.mxu0 0.0
    %260 = vmatpush2.msra.mxu0 0.0
    %261 = vmatprep.subr.mxu0 0.0
    %262 = vmatpush2.msra.mxu0 0.0
    %263 = vmatprep.subr.mxu0 0.0
    %264 = vmatpush2.msra.mxu0 0.0
    %265 = vmatprep.subr.mxu0 0.0
    %266 = vmatpush2.msra.mxu0 0.0
    %267 = vmatprep.subr.mxu0 0.0
    %268 = vmatpush2.msra.mxu0 0.0
    %269 = vmatprep.subr.mxu0 0.0
    %270 = vmatpush2.msra.mxu0 0.0
    %271 = vmatprep.subr.mxu0 0.0
    %272 = vmatpush2.msra.mxu0 0.0
    %273 = vmatprep.subr.mxu0 0.0
    %274 = vmatpush2.msra.mxu0 0.0
    %275 = vmatprep.subr.mxu0 0.0
    %276 = vmatpush2.msra.mxu0 0.0
    %277 = vmatprep.subr.mxu0 0.0
    %278 = vmatpush2.msra.mxu0 0.0
    %279 = vmatprep.subr.mxu0 0.0
    %280 = vmatpush2.msra.mxu0 0.0
    %281 = vmatprep.subr.mxu0 0.0
    %282 = vmatpush2.msra.mxu0 0.0
    %283 = vmatprep.subr.mxu0 0.0
    %284 = vmatpush2.msra.mxu0 0.0
    %285 = vmatprep.subr.mxu0 0.0
    %286 = vmatpush2.msra.mxu0 0.0
    %287 = vmatprep.subr.mxu0 0.0
    %288 = vmatpush2.msra.mxu0 0.0
    %289 = vmatprep.mubr.f32.mxu0 0.0
    %290 = vmatmul.mubr.f32.gmra.mxu0 %v223
    %v291 = vpop.f32.mrf.mxu0
    %v292 = vadd.f32 %v219, %v291
    %v293 = vpop.f32.mrf.mxu0
    %294 = vdwg.mxu0
    %vm295 = vcmask 25600
    %296 = vst.msk [vmem:[#allocation2] sm:$0x3] %vm295, %v292
    // Predicated region
    $region30: #{tpu_custom_call.1} parent=1 // pred_check
      _
    $region31: #{tpu_custom_call.1} parent=1 // pred_check_branch
      %298 = sbr.rel (0) target = $region33
    $region32: #{tpu_custom_call.1} parent=1 // pred_region
      %s300 = ssub.s32 32, 32
      %301 = vsyncadd [#allocation3], %s300
      %s303 = sshll.u32 [#allocation2], 4
      %s304 = int_to_ptr.vmem [resolvable:$true] %s303
      %306 = dma.vmem_to_hbm [thread:$0]  %s304, 32, %s7, [#allocation3]
    $region33: #{tpu_custom_call.1} parent=1 // pred_fallthru
      _
    // Predicated region
    $region34: #{tpu_custom_call.1} parent=1 // pred_check
      _
    $region35: #{tpu_custom_call.1} parent=1 // pred_check_branch
      %308 = sbr.rel (0) target = $region37
    $region36: #{tpu_custom_call.1} parent=1 // pred_region
      %309 = dma.done [#allocation3], 32
    $region37: #{tpu_custom_call.1} parent=1 // pred_fallthru
      _
    %310 = vsyncpa [#allocation3], 1

</llo_original>
